<compile_context>
chip_gen: v7x
topology: tpu7x:2x2x1
jax: 0.10.0
libtpu: 0.0.40
codegen_flags: <defaults>
</compile_context>

<pallas_src>
from functools import partial

import jax
import jax.numpy as jnp
from jax.experimental import pallas as pl
from jax.experimental.pallas import tpu as pltpu


def _conv1x1_pad_add_kernel(x_ref, w_ref, b_ref, other_ref, o_ref, xp_ref, *, H, W):
    # x_ref:     (N, Cin,  H*W)     unpadded activations, spatial flat in lanes
    # w_ref:     (Cout, Cin)        1x1 conv weight
    # b_ref:     (Cout, 1)          bias
    # other_ref: (N, Cout, Hp*Wp)   tensor to add (padded spatial size, flat)
    # o_ref:     (N, Cout, Hp*Wp)   output (padded spatial size, flat)
    # xp_ref:    (Cin, Hp*Wp)       VMEM scratch: zero-padded x, rebuilt per batch
    N, Cin, _ = x_ref.shape
    Wp = W + 2

    w = w_ref[...]                                       # (Cout, Cin)
    b = b_ref[...]                                       # (Cout, 1)

    # Zero-fill the scratch ONCE: every batch overwrites exactly the same
    # interior positions, so the zero border stays valid across the batch loop.
    xp_ref[...] = jnp.zeros_like(xp_ref)

    for n in range(N):
        x_n = x_ref[n]                                   # (Cin, H*W)

        # Scatter the H unpadded rows into the interior of the padded flat
        # scratch. Write-only, only Cin(=3) sublanes wide; no output RMW.
        for i in range(H):
            dst = (i + 1) * Wp + 1
            xp_ref[:, dst:dst + W] = x_n[:, i * W:(i + 1) * W]

        xp = xp_ref[...]                                 # (Cin, Hp*Wp)

        # 1x1 conv as Cin broadcast FMAs on the VPU across all Hp*Wp lanes
        # (border lanes multiply zeros — trivial extra VPU work).
        conv = w[:, 0:1] * xp[0:1, :]                    # (Cout, Hp*Wp)
        for c in range(1, Cin):
            conv = conv + w[:, c:c + 1] * xp[c:c + 1, :]

        # Exactly one lane-dense store per batch slab.
        o_ref[n] = (other_ref[n] + b + conv).astype(o_ref.dtype)


def conv1x1_pad_add(x_nchw, weight, bias, other_nchw):
    """Equivalent of: Conv2d(Cin, Cout, 1, stride=1, padding=1)(x) + other.

    x_nchw:     (N, Cin, H, W)
    weight:     (Cout, Cin) or (Cout, Cin, 1, 1)
    bias:       (Cout,)
    other_nchw: (N, Cout, H+2, W+2)
    returns:    (N, Cout, H+2, W+2)
    """
    N, Cin, H, W = x_nchw.shape
    Cout = bias.shape[0]
    Hp, Wp = H + 2, W + 2
    HW, HpWp = H * W, Hp * Wp

    f32 = jnp.float32
    # Only free, contiguous reshapes on the XLA side (no transpose, no pad).
    x_flat = x_nchw.reshape(N, Cin, HW).astype(f32)
    other_flat = other_nchw.reshape(N, Cout, HpWp).astype(f32)
    w = weight.reshape(Cout, Cin).astype(f32)
    b = bias.reshape(Cout, 1).astype(f32)

    out_flat = pl.pallas_call(
        partial(_conv1x1_pad_add_kernel, H=H, W=W),
        out_shape=jax.ShapeDtypeStruct((N, Cout, HpWp), f32),
        in_specs=[
            pl.BlockSpec(memory_space=pltpu.MemorySpace.VMEM),  # x (full block)
            pl.BlockSpec(memory_space=pltpu.MemorySpace.VMEM),  # weight
            pl.BlockSpec(memory_space=pltpu.MemorySpace.VMEM),  # bias
            pl.BlockSpec(memory_space=pltpu.MemorySpace.VMEM),  # other
        ],
        out_specs=pl.BlockSpec(memory_space=pltpu.MemorySpace.VMEM),
        scratch_shapes=[pltpu.VMEM((Cin, HpWp), f32)],
        # Output is written exactly once per element -> safe to reuse `other`'s buffer.
        input_output_aliases={3: 0},
    )(x_flat, w, b, other_flat)

    return out_flat.reshape(N, Cout, Hp, Wp)


def reference(x_nchw, weight, bias, other_nchw):
    """Pure-JAX reference for correctness check."""
    x_pad = jnp.pad(x_nchw, ((0, 0), (0, 0), (1, 1), (1, 1)))
    v1 = jnp.einsum("nchw,oc->nohw", x_pad, weight) + bias[None, :, None, None]
    return v1 + other_nchw


if __name__ == "__main__":
    key = jax.random.PRNGKey(0)
    k_x, k_w, k_b, k_o = jax.random.split(key, 4)

    # Small shapes consistent with the module: N=2, Cin=3, H=W=16, Cout=8.
    N, Cin, H, W, Cout = 2, 3, 16, 16, 8
    x1 = jax.random.normal(k_x, (N, Cin, H, W), dtype=jnp.float32)

    # Deterministic "Conv2d(3, 8, 1)" parameters.
    weight = jax.random.normal(k_w, (Cout, Cin), dtype=jnp.float32) * 0.1
    bias = jax.random.normal(k_b, (Cout,), dtype=jnp.float32) * 0.1

    # `other` must match the conv output shape (H+2, W+2 because padding=1, k=1).
    other = jax.random.normal(k_o, (N, Cout, H + 2, W + 2), dtype=jnp.float32)

    fn = jax.jit(conv1x1_pad_add)
    out = jax.block_until_ready(fn(x1, weight, bias, other))

    ref = reference(x1, weight, bias, other)
    assert out.shape == (N, Cout, H + 2, W + 2), out.shape
    assert jnp.allclose(out, ref, atol=1e-5, rtol=1e-5), "mismatch vs reference"

    print("KERNEL_OK")
</pallas_src>

<mosaic_0001>
module attributes {stable_mosaic.version = 11 : i64} {
  func.func @_conv1x1_pad_add_kernel(%arg0: memref<2x3x256xf32, #tpu.memory_space<vmem>>, %arg1: memref<8x3xf32, #tpu.memory_space<vmem>>, %arg2: memref<8x1xf32, #tpu.memory_space<vmem>>, %arg3: memref<2x8x324xf32, #tpu.memory_space<vmem>>, %arg4: memref<2x8x324xf32, #tpu.memory_space<vmem>>, %arg5: memref<3x324xf32, #tpu.memory_space<vmem>>) attributes {dimension_semantics = [], scalar_prefetch = 0 : i64, scratch_operands = 1 : i64, tpu.core_type = #tpu.core_type<tc>} {
    %c0 = arith.constant 0 : index
    %c0_0 = arith.constant 0 : index
    %0 = vector.load %arg1[%c0, %c0_0] : memref<8x3xf32, #tpu.memory_space<vmem>>, vector<8x3xf32>
    %c0_1 = arith.constant 0 : index
    %c0_2 = arith.constant 0 : index
    %1 = vector.load %arg2[%c0_1, %c0_2] : memref<8x1xf32, #tpu.memory_space<vmem>>, vector<8x1xf32>
    %cst = arith.constant 0.000000e+00 : f32
    %2 = vector.broadcast %cst : f32 to vector<3x324xf32>
    %c0_3 = arith.constant 0 : index
    %c0_4 = arith.constant 0 : index
    %3 = vector.load %arg5[%c0_3, %c0_4] : memref<3x324xf32, #tpu.memory_space<vmem>>, vector<3x324xf32>
    tpu.vector_store %arg5[%c0_3, %c0_4], %2 {strides = array<i32>} : memref<3x324xf32, #tpu.memory_space<vmem>>, vector<3x324xf32>,
    %c0_5 = arith.constant 0 : index
    %c0_6 = arith.constant 0 : index
    %c0_7 = arith.constant 0 : index
    %4 = vector.load %arg0[%c0_5, %c0_6, %c0_7] : memref<2x3x256xf32, #tpu.memory_space<vmem>>, vector<1x3x256xf32>
    %5 = vector.shape_cast %4 : vector<1x3x256xf32> to vector<3x256xf32>
    %6 = vector.extract_strided_slice %5 {offsets = [0, 0], sizes = [3, 16], strides = [1, 1]} : vector<3x256xf32> to vector<3x16xf32>
    %c0_8 = arith.constant 0 : index
    %c19 = arith.constant 19 : index
    %7 = vector.load %arg5[%c0_8, %c19] : memref<3x324xf32, #tpu.memory_space<vmem>>, vector<3x16xf32>
    tpu.vector_store %arg5[%c0_8, %c19], %6 {strides = array<i32>} : memref<3x324xf32, #tpu.memory_space<vmem>>, vector<3x16xf32>,
    %8 = vector.extract_strided_slice %5 {offsets = [0, 16], sizes = [3, 16], strides = [1, 1]} : vector<3x256xf32> to vector<3x16xf32>
    %c0_9 = arith.constant 0 : index
    %c37 = arith.constant 37 : index
    %9 = vector.load %arg5[%c0_9, %c37] : memref<3x324xf32, #tpu.memory_space<vmem>>, vector<3x16xf32>
    tpu.vector_store %arg5[%c0_9, %c37], %8 {strides = array<i32>} : memref<3x324xf32, #tpu.memory_space<vmem>>, vector<3x16xf32>,
    %10 = vector.extract_strided_slice %5 {offsets = [0, 32], sizes = [3, 16], strides = [1, 1]} : vector<3x256xf32> to vector<3x16xf32>
    %c0_10 = arith.constant 0 : index
    %c55 = arith.constant 55 : index
    %11 = vector.load %arg5[%c0_10, %c55] : memref<3x324xf32, #tpu.memory_space<vmem>>, vector<3x16xf32>
    tpu.vector_store %arg5[%c0_10, %c55], %10 {strides = array<i32>} : memref<3x324xf32, #tpu.memory_space<vmem>>, vector<3x16xf32>,
    %12 = vector.extract_strided_slice %5 {offsets = [0, 48], sizes = [3, 16], strides = [1, 1]} : vector<3x256xf32> to vector<3x16xf32>
    %c0_11 = arith.constant 0 : index
    %c73 = arith.constant 73 : index
    %13 = vector.load %arg5[%c0_11, %c73] : memref<3x324xf32, #tpu.memory_space<vmem>>, vector<3x16xf32>
    tpu.vector_store %arg5[%c0_11, %c73], %12 {strides = array<i32>} : memref<3x324xf32, #tpu.memory_space<vmem>>, vector<3x16xf32>,
    %14 = vector.extract_strided_slice %5 {offsets = [0, 64], sizes = [3, 16], strides = [1, 1]} : vector<3x256xf32> to vector<3x16xf32>
    %c0_12 = arith.constant 0 : index
    %c91 = arith.constant 91 : index
    %15 = vector.load %arg5[%c0_12, %c91] : memref<3x324xf32, #tpu.memory_space<vmem>>, vector<3x16xf32>
    tpu.vector_store %arg5[%c0_12, %c91], %14 {strides = array<i32>} : memref<3x324xf32, #tpu.memory_space<vmem>>, vector<3x16xf32>,
    %16 = vector.extract_strided_slice %5 {offsets = [0, 80], sizes = [3, 16], strides = [1, 1]} : vector<3x256xf32> to vector<3x16xf32>
    %c0_13 = arith.constant 0 : index
    %c109 = arith.constant 109 : index
    %17 = vector.load %arg5[%c0_13, %c109] : memref<3x324xf32, #tpu.memory_space<vmem>>, vector<3x16xf32>
    tpu.vector_store %arg5[%c0_13, %c109], %16 {strides = array<i32>} : memref<3x324xf32, #tpu.memory_space<vmem>>, vector<3x16xf32>,
    %18 = vector.extract_strided_slice %5 {offsets = [0, 96], sizes = [3, 16], strides = [1, 1]} : vector<3x256xf32> to vector<3x16xf32>
    %c0_14 = arith.constant 0 : index
    %c127 = arith.constant 127 : index
    %19 = vector.load %arg5[%c0_14, %c127] : memref<3x324xf32, #tpu.memory_space<vmem>>, vector<3x16xf32>
    tpu.vector_store %arg5[%c0_14, %c127], %18 {strides = array<i32>} : memref<3x324xf32, #tpu.memory_space<vmem>>, vector<3x16xf32>,
    %20 = vector.extract_strided_slice %5 {offsets = [0, 112], sizes = [3, 16], strides = [1, 1]} : vector<3x256xf32> to vector<3x16xf32>
    %c0_15 = arith.constant 0 : index
    %c145 = arith.constant 145 : index
    %21 = vector.load %arg5[%c0_15, %c145] : memref<3x324xf32, #tpu.memory_space<vmem>>, vector<3x16xf32>
    tpu.vector_store %arg5[%c0_15, %c145], %20 {strides = array<i32>} : memref<3x324xf32, #tpu.memory_space<vmem>>, vector<3x16xf32>,
    %22 = vector.extract_strided_slice %5 {offsets = [0, 128], sizes = [3, 16], strides = [1, 1]} : vector<3x256xf32> to vector<3x16xf32>
    %c0_16 = arith.constant 0 : index
    %c163 = arith.constant 163 : index
    %23 = vector.load %arg5[%c0_16, %c163] : memref<3x324xf32, #tpu.memory_space<vmem>>, vector<3x16xf32>
    tpu.vector_store %arg5[%c0_16, %c163], %22 {strides = array<i32>} : memref<3x324xf32, #tpu.memory_space<vmem>>, vector<3x16xf32>,
    %24 = vector.extract_strided_slice %5 {offsets = [0, 144], sizes = [3, 16], strides = [1, 1]} : vector<3x256xf32> to vector<3x16xf32>
    %c0_17 = arith.constant 0 : index
    %c181 = arith.constant 181 : index
    %25 = vector.load %arg5[%c0_17, %c181] : memref<3x324xf32, #tpu.memory_space<vmem>>, vector<3x16xf32>
    tpu.vector_store %arg5[%c0_17, %c181], %24 {strides = array<i32>} : memref<3x324xf32, #tpu.memory_space<vmem>>, vector<3x16xf32>,
    %26 = vector.extract_strided_slice %5 {offsets = [0, 160], sizes = [3, 16], strides = [1, 1]} : vector<3x256xf32> to vector<3x16xf32>
    %c0_18 = arith.constant 0 : index
    %c199 = arith.constant 199 : index
    %27 = vector.load %arg5[%c0_18, %c199] : memref<3x324xf32, #tpu.memory_space<vmem>>, vector<3x16xf32>
    tpu.vector_store %arg5[%c0_18, %c199], %26 {strides = array<i32>} : memref<3x324xf32, #tpu.memory_space<vmem>>, vector<3x16xf32>,
    %28 = vector.extract_strided_slice %5 {offsets = [0, 176], sizes = [3, 16], strides = [1, 1]} : vector<3x256xf32> to vector<3x16xf32>
    %c0_19 = arith.constant 0 : index
    %c217 = arith.constant 217 : index
    %29 = vector.load %arg5[%c0_19, %c217] : memref<3x324xf32, #tpu.memory_space<vmem>>, vector<3x16xf32>
    tpu.vector_store %arg5[%c0_19, %c217], %28 {strides = array<i32>} : memref<3x324xf32, #tpu.memory_space<vmem>>, vector<3x16xf32>,
    %30 = vector.extract_strided_slice %5 {offsets = [0, 192], sizes = [3, 16], strides = [1, 1]} : vector<3x256xf32> to vector<3x16xf32>
    %c0_20 = arith.constant 0 : index
    %c235 = arith.constant 235 : index
    %31 = vector.load %arg5[%c0_20, %c235] : memref<3x324xf32, #tpu.memory_space<vmem>>, vector<3x16xf32>
    tpu.vector_store %arg5[%c0_20, %c235], %30 {strides = array<i32>} : memref<3x324xf32, #tpu.memory_space<vmem>>, vector<3x16xf32>,
    %32 = vector.extract_strided_slice %5 {offsets = [0, 208], sizes = [3, 16], strides = [1, 1]} : vector<3x256xf32> to vector<3x16xf32>
    %c0_21 = arith.constant 0 : index
    %c253 = arith.constant 253 : index
    %33 = vector.load %arg5[%c0_21, %c253] : memref<3x324xf32, #tpu.memory_space<vmem>>, vector<3x16xf32>
    tpu.vector_store %arg5[%c0_21, %c253], %32 {strides = array<i32>} : memref<3x324xf32, #tpu.memory_space<vmem>>, vector<3x16xf32>,
    %34 = vector.extract_strided_slice %5 {offsets = [0, 224], sizes = [3, 16], strides = [1, 1]} : vector<3x256xf32> to vector<3x16xf32>
    %c0_22 = arith.constant 0 : index
    %c271 = arith.constant 271 : index
    %35 = vector.load %arg5[%c0_22, %c271] : memref<3x324xf32, #tpu.memory_space<vmem>>, vector<3x16xf32>
    tpu.vector_store %arg5[%c0_22, %c271], %34 {strides = array<i32>} : memref<3x324xf32, #tpu.memory_space<vmem>>, vector<3x16xf32>,
    %36 = vector.extract_strided_slice %5 {offsets = [0, 240], sizes = [3, 16], strides = [1, 1]} : vector<3x256xf32> to vector<3x16xf32>
    %c0_23 = arith.constant 0 : index
    %c289 = arith.constant 289 : index
    %37 = vector.load %arg5[%c0_23, %c289] : memref<3x324xf32, #tpu.memory_space<vmem>>, vector<3x16xf32>
    tpu.vector_store %arg5[%c0_23, %c289], %36 {strides = array<i32>} : memref<3x324xf32, #tpu.memory_space<vmem>>, vector<3x16xf32>,
    %c0_24 = arith.constant 0 : index
    %c0_25 = arith.constant 0 : index
    %38 = vector.load %arg5[%c0_24, %c0_25] : memref<3x324xf32, #tpu.memory_space<vmem>>, vector<3x324xf32>
    %39 = vector.extract_strided_slice %0 {offsets = [0, 0], sizes = [8, 1], strides = [1, 1]} : vector<8x3xf32> to vector<8x1xf32>
    %40 = vector.extract_strided_slice %38 {offsets = [0, 0], sizes = [1, 324], strides = [1, 1]} : vector<3x324xf32> to vector<1x324xf32>
    %41 = vector.broadcast %39 : vector<8x1xf32> to vector<8x324xf32>
    %42 = vector.broadcast %40 : vector<1x324xf32> to vector<8x324xf32>
    %43 = arith.mulf %41, %42 : vector<8x324xf32>
    %44 = vector.extract_strided_slice %0 {offsets = [0, 1], sizes = [8, 1], strides = [1, 1]} : vector<8x3xf32> to vector<8x1xf32>
    %45 = vector.extract_strided_slice %38 {offsets = [1, 0], sizes = [1, 324], strides = [1, 1]} : vector<3x324xf32> to vector<1x324xf32>
    %46 = vector.broadcast %44 : vector<8x1xf32> to vector<8x324xf32>
    %47 = vector.broadcast %45 : vector<1x324xf32> to vector<8x324xf32>
    %48 = arith.mulf %46, %47 : vector<8x324xf32>
    %49 = arith.addf %43, %48 : vector<8x324xf32>
    %50 = vector.extract_strided_slice %0 {offsets = [0, 2], sizes = [8, 1], strides = [1, 1]} : vector<8x3xf32> to vector<8x1xf32>
    %51 = vector.extract_strided_slice %38 {offsets = [2, 0], sizes = [1, 324], strides = [1, 1]} : vector<3x324xf32> to vector<1x324xf32>
    %52 = vector.broadcast %50 : vector<8x1xf32> to vector<8x324xf32>
    %53 = vector.broadcast %51 : vector<1x324xf32> to vector<8x324xf32>
    %54 = arith.mulf %52, %53 : vector<8x324xf32>
    %55 = arith.addf %49, %54 : vector<8x324xf32>
    %c0_26 = arith.constant 0 : index
    %c0_27 = arith.constant 0 : index
    %c0_28 = arith.constant 0 : index
    %56 = vector.load %arg3[%c0_26, %c0_27, %c0_28] : memref<2x8x324xf32, #tpu.memory_space<vmem>>, vector<1x8x324xf32>
    %57 = vector.shape_cast %56 : vector<1x8x324xf32> to vector<8x324xf32>
    %58 = vector.broadcast %1 : vector<8x1xf32> to vector<8x324xf32>
    %59 = arith.addf %57, %58 : vector<8x324xf32>
    %60 = arith.addf %59, %55 : vector<8x324xf32>
    %c0_29 = arith.constant 0 : index
    %c0_30 = arith.constant 0 : index
    %c0_31 = arith.constant 0 : index
    %61 = vector.load %arg4[%c0_29, %c0_30, %c0_31] : memref<2x8x324xf32, #tpu.memory_space<vmem>>, vector<1x8x324xf32>
    %62 = vector.shape_cast %61 : vector<1x8x324xf32> to vector<8x324xf32>
    %63 = vector.shape_cast %60 : vector<8x324xf32> to vector<1x8x324xf32>
    tpu.vector_store %arg4[%c0_29, %c0_30, %c0_31], %63 {strides = array<i32>} : memref<2x8x324xf32, #tpu.memory_space<vmem>>, vector<1x8x324xf32>,
    %c1 = arith.constant 1 : index
    %c0_32 = arith.constant 0 : index
    %c0_33 = arith.constant 0 : index
    %64 = vector.load %arg0[%c1, %c0_32, %c0_33] : memref<2x3x256xf32, #tpu.memory_space<vmem>>, vector<1x3x256xf32>
    %65 = vector.shape_cast %64 : vector<1x3x256xf32> to vector<3x256xf32>
    %66 = vector.extract_strided_slice %65 {offsets = [0, 0], sizes = [3, 16], strides = [1, 1]} : vector<3x256xf32> to vector<3x16xf32>
    %c0_34 = arith.constant 0 : index
    %c19_35 = arith.constant 19 : index
    %67 = vector.load %arg5[%c0_34, %c19_35] : memref<3x324xf32, #tpu.memory_space<vmem>>, vector<3x16xf32>
    tpu.vector_store %arg5[%c0_34, %c19_35], %66 {strides = array<i32>} : memref<3x324xf32, #tpu.memory_space<vmem>>, vector<3x16xf32>,
    %68 = vector.extract_strided_slice %65 {offsets = [0, 16], sizes = [3, 16], strides = [1, 1]} : vector<3x256xf32> to vector<3x16xf32>
    %c0_36 = arith.constant 0 : index
    %c37_37 = arith.constant 37 : index
    %69 = vector.load %arg5[%c0_36, %c37_37] : memref<3x324xf32, #tpu.memory_space<vmem>>, vector<3x16xf32>
    tpu.vector_store %arg5[%c0_36, %c37_37], %68 {strides = array<i32>} : memref<3x324xf32, #tpu.memory_space<vmem>>, vector<3x16xf32>,
    %70 = vector.extract_strided_slice %65 {offsets = [0, 32], sizes = [3, 16], strides = [1, 1]} : vector<3x256xf32> to vector<3x16xf32>
    %c0_38 = arith.constant 0 : index
    %c55_39 = arith.constant 55 : index
    %71 = vector.load %arg5[%c0_38, %c55_39] : memref<3x324xf32, #tpu.memory_space<vmem>>, vector<3x16xf32>
    tpu.vector_store %arg5[%c0_38, %c55_39], %70 {strides = array<i32>} : memref<3x324xf32, #tpu.memory_space<vmem>>, vector<3x16xf32>,
    %72 = vector.extract_strided_slice %65 {offsets = [0, 48], sizes = [3, 16], strides = [1, 1]} : vector<3x256xf32> to vector<3x16xf32>
    %c0_40 = arith.constant 0 : index
    %c73_41 = arith.constant 73 : index
    %73 = vector.load %arg5[%c0_40, %c73_41] : memref<3x324xf32, #tpu.memory_space<vmem>>, vector<3x16xf32>
    tpu.vector_store %arg5[%c0_40, %c73_41], %72 {strides = array<i32>} : memref<3x324xf32, #tpu.memory_space<vmem>>, vector<3x16xf32>,
    %74 = vector.extract_strided_slice %65 {offsets = [0, 64], sizes = [3, 16], strides = [1, 1]} : vector<3x256xf32> to vector<3x16xf32>
    %c0_42 = arith.constant 0 : index
    %c91_43 = arith.constant 91 : index
    %75 = vector.load %arg5[%c0_42, %c91_43] : memref<3x324xf32, #tpu.memory_space<vmem>>, vector<3x16xf32>
    tpu.vector_store %arg5[%c0_42, %c91_43], %74 {strides = array<i32>} : memref<3x324xf32, #tpu.memory_space<vmem>>, vector<3x16xf32>,
    %76 = vector.extract_strided_slice %65 {offsets = [0, 80], sizes = [3, 16], strides = [1, 1]} : vector<3x256xf32> to vector<3x16xf32>
    %c0_44 = arith.constant 0 : index
    %c109_45 = arith.constant 109 : index
    %77 = vector.load %arg5[%c0_44, %c109_45] : memref<3x324xf32, #tpu.memory_space<vmem>>, vector<3x16xf32>
    tpu.vector_store %arg5[%c0_44, %c109_45], %76 {strides = array<i32>} : memref<3x324xf32, #tpu.memory_space<vmem>>, vector<3x16xf32>,
    %78 = vector.extract_strided_slice %65 {offsets = [0, 96], sizes = [3, 16], strides = [1, 1]} : vector<3x256xf32> to vector<3x16xf32>
    %c0_46 = arith.constant 0 : index
    %c127_47 = arith.constant 127 : index
    %79 = vector.load %arg5[%c0_46, %c127_47] : memref<3x324xf32, #tpu.memory_space<vmem>>, vector<3x16xf32>
    tpu.vector_store %arg5[%c0_46, %c127_47], %78 {strides = array<i32>} : memref<3x324xf32, #tpu.memory_space<vmem>>, vector<3x16xf32>,
    %80 = vector.extract_strided_slice %65 {offsets = [0, 112], sizes = [3, 16], strides = [1, 1]} : vector<3x256xf32> to vector<3x16xf32>
    %c0_48 = arith.constant 0 : index
    %c145_49 = arith.constant 145 : index
    %81 = vector.load %arg5[%c0_48, %c145_49] : memref<3x324xf32, #tpu.memory_space<vmem>>, vector<3x16xf32>
    tpu.vector_store %arg5[%c0_48, %c145_49], %80 {strides = array<i32>} : memref<3x324xf32, #tpu.memory_space<vmem>>, vector<3x16xf32>,
    %82 = vector.extract_strided_slice %65 {offsets = [0, 128], sizes = [3, 16], strides = [1, 1]} : vector<3x256xf32> to vector<3x16xf32>
    %c0_50 = arith.constant 0 : index
    %c163_51 = arith.constant 163 : index
    %83 = vector.load %arg5[%c0_50, %c163_51] : memref<3x324xf32, #tpu.memory_space<vmem>>, vector<3x16xf32>
    tpu.vector_store %arg5[%c0_50, %c163_51], %82 {strides = array<i32>} : memref<3x324xf32, #tpu.memory_space<vmem>>, vector<3x16xf32>,
    %84 = vector.extract_strided_slice %65 {offsets = [0, 144], sizes = [3, 16], strides = [1, 1]} : vector<3x256xf32> to vector<3x16xf32>
    %c0_52 = arith.constant 0 : index
    %c181_53 = arith.constant 181 : index
    %85 = vector.load %arg5[%c0_52, %c181_53] : memref<3x324xf32, #tpu.memory_space<vmem>>, vector<3x16xf32>
    tpu.vector_store %arg5[%c0_52, %c181_53], %84 {strides = array<i32>} : memref<3x324xf32, #tpu.memory_space<vmem>>, vector<3x16xf32>,
    %86 = vector.extract_strided_slice %65 {offsets = [0, 160], sizes = [3, 16], strides = [1, 1]} : vector<3x256xf32> to vector<3x16xf32>
    %c0_54 = arith.constant 0 : index
    %c199_55 = arith.constant 199 : index
    %87 = vector.load %arg5[%c0_54, %c199_55] : memref<3x324xf32, #tpu.memory_space<vmem>>, vector<3x16xf32>
    tpu.vector_store %arg5[%c0_54, %c199_55], %86 {strides = array<i32>} : memref<3x324xf32, #tpu.memory_space<vmem>>, vector<3x16xf32>,
    %88 = vector.extract_strided_slice %65 {offsets = [0, 176], sizes = [3, 16], strides = [1, 1]} : vector<3x256xf32> to vector<3x16xf32>
    %c0_56 = arith.constant 0 : index
    %c217_57 = arith.constant 217 : index
    %89 = vector.load %arg5[%c0_56, %c217_57] : memref<3x324xf32, #tpu.memory_space<vmem>>, vector<3x16xf32>
    tpu.vector_store %arg5[%c0_56, %c217_57], %88 {strides = array<i32>} : memref<3x324xf32, #tpu.memory_space<vmem>>, vector<3x16xf32>,
    %90 = vector.extract_strided_slice %65 {offsets = [0, 192], sizes = [3, 16], strides = [1, 1]} : vector<3x256xf32> to vector<3x16xf32>
    %c0_58 = arith.constant 0 : index
    %c235_59 = arith.constant 235 : index
    %91 = vector.load %arg5[%c0_58, %c235_59] : memref<3x324xf32, #tpu.memory_space<vmem>>, vector<3x16xf32>
    tpu.vector_store %arg5[%c0_58, %c235_59], %90 {strides = array<i32>} : memref<3x324xf32, #tpu.memory_space<vmem>>, vector<3x16xf32>,
    %92 = vector.extract_strided_slice %65 {offsets = [0, 208], sizes = [3, 16], strides = [1, 1]} : vector<3x256xf32> to vector<3x16xf32>
    %c0_60 = arith.constant 0 : index
    %c253_61 = arith.constant 253 : index
    %93 = vector.load %arg5[%c0_60, %c253_61] : memref<3x324xf32, #tpu.memory_space<vmem>>, vector<3x16xf32>
    tpu.vector_store %arg5[%c0_60, %c253_61], %92 {strides = array<i32>} : memref<3x324xf32, #tpu.memory_space<vmem>>, vector<3x16xf32>,
    %94 = vector.extract_strided_slice %65 {offsets = [0, 224], sizes = [3, 16], strides = [1, 1]} : vector<3x256xf32> to vector<3x16xf32>
    %c0_62 = arith.constant 0 : index
    %c271_63 = arith.constant 271 : index
    %95 = vector.load %arg5[%c0_62, %c271_63] : memref<3x324xf32, #tpu.memory_space<vmem>>, vector<3x16xf32>
    tpu.vector_store %arg5[%c0_62, %c271_63], %94 {strides = array<i32>} : memref<3x324xf32, #tpu.memory_space<vmem>>, vector<3x16xf32>,
    %96 = vector.extract_strided_slice %65 {offsets = [0, 240], sizes = [3, 16], strides = [1, 1]} : vector<3x256xf32> to vector<3x16xf32>
    %c0_64 = arith.constant 0 : index
    %c289_65 = arith.constant 289 : index
    %97 = vector.load %arg5[%c0_64, %c289_65] : memref<3x324xf32, #tpu.memory_space<vmem>>, vector<3x16xf32>
    tpu.vector_store %arg5[%c0_64, %c289_65], %96 {strides = array<i32>} : memref<3x324xf32, #tpu.memory_space<vmem>>, vector<3x16xf32>,
    %c0_66 = arith.constant 0 : index
    %c0_67 = arith.constant 0 : index
    %98 = vector.load %arg5[%c0_66, %c0_67] : memref<3x324xf32, #tpu.memory_space<vmem>>, vector<3x324xf32>
    %99 = vector.extract_strided_slice %0 {offsets = [0, 0], sizes = [8, 1], strides = [1, 1]} : vector<8x3xf32> to vector<8x1xf32>
    %100 = vector.extract_strided_slice %98 {offsets = [0, 0], sizes = [1, 324], strides = [1, 1]} : vector<3x324xf32> to vector<1x324xf32>
    %101 = vector.broadcast %99 : vector<8x1xf32> to vector<8x324xf32>
    %102 = vector.broadcast %100 : vector<1x324xf32> to vector<8x324xf32>
    %103 = arith.mulf %101, %102 : vector<8x324xf32>
    %104 = vector.extract_strided_slice %0 {offsets = [0, 1], sizes = [8, 1], strides = [1, 1]} : vector<8x3xf32> to vector<8x1xf32>
    %105 = vector.extract_strided_slice %98 {offsets = [1, 0], sizes = [1, 324], strides = [1, 1]} : vector<3x324xf32> to vector<1x324xf32>
    %106 = vector.broadcast %104 : vector<8x1xf32> to vector<8x324xf32>
    %107 = vector.broadcast %105 : vector<1x324xf32> to vector<8x324xf32>
    %108 = arith.mulf %106, %107 : vector<8x324xf32>
    %109 = arith.addf %103, %108 : vector<8x324xf32>
    %110 = vector.extract_strided_slice %0 {offsets = [0, 2], sizes = [8, 1], strides = [1, 1]} : vector<8x3xf32> to vector<8x1xf32>
    %111 = vector.extract_strided_slice %98 {offsets = [2, 0], sizes = [1, 324], strides = [1, 1]} : vector<3x324xf32> to vector<1x324xf32>
    %112 = vector.broadcast %110 : vector<8x1xf32> to vector<8x324xf32>
    %113 = vector.broadcast %111 : vector<1x324xf32> to vector<8x324xf32>
    %114 = arith.mulf %112, %113 : vector<8x324xf32>
    %115 = arith.addf %109, %114 : vector<8x324xf32>
    %c1_68 = arith.constant 1 : index
    %c0_69 = arith.constant 0 : index
    %c0_70 = arith.constant 0 : index
    %116 = vector.load %arg3[%c1_68, %c0_69, %c0_70] : memref<2x8x324xf32, #tpu.memory_space<vmem>>, vector<1x8x324xf32>
    %117 = vector.shape_cast %116 : vector<1x8x324xf32> to vector<8x324xf32>
    %118 = vector.broadcast %1 : vector<8x1xf32> to vector<8x324xf32>
    %119 = arith.addf %117, %118 : vector<8x324xf32>
    %120 = arith.addf %119, %115 : vector<8x324xf32>
    %c1_71 = arith.constant 1 : index
    %c0_72 = arith.constant 0 : index
    %c0_73 = arith.constant 0 : index
    %121 = vector.load %arg4[%c1_71, %c0_72, %c0_73] : memref<2x8x324xf32, #tpu.memory_space<vmem>>, vector<1x8x324xf32>
    %122 = vector.shape_cast %121 : vector<1x8x324xf32> to vector<8x324xf32>
    %123 = vector.shape_cast %120 : vector<8x324xf32> to vector<1x8x324xf32>
    tpu.vector_store %arg4[%c1_71, %c0_72, %c0_73], %123 {strides = array<i32>} : memref<2x8x324xf32, #tpu.memory_space<vmem>>, vector<1x8x324xf32>,
    return
  }
}

</mosaic_0001>

<llo_original>
// kernel: conv1x1_pad_add.1
$region0: #{conv1x1_pad_add.1}
  #allocation0 [shape = 'u32[]', space=smem, size = 0x4, offset = 0x4, fixed_abs, tag = 'smem constant byte address 0x4 - core index']
  #allocation1 [shape = 'u32[144,128]{1,0:T(1,128)}', space=vmem, size = 0x12000, scoped, tag = 'internal scratch']
  #allocation2 [shape = 'f32[3,324]{1,0:T(4,128)}', space=vmem, size = 0x1800, scoped, tag = 'scratch operand']
  %s0 = inlined_call_operand.vmem [shape: f32[2,3,256], index: 0, kind: input, shape index: {}]
  %s1 = inlined_call_operand.vmem [shape: f32[8,3], index: 1, kind: input, shape index: {}]
  %s2 = inlined_call_operand.vmem [shape: f32[8,1], index: 2, kind: input, shape index: {}]
  %s3 = inlined_call_operand.vmem [shape: f32[2,8,324], index: 3, kind: input, shape index: {}, may-alias: {3,4}]
  %s4 = inlined_call_operand.vmem [shape: f32[2,8,324], index: 4, kind: output, shape index: {}, may-alias: {3,4}]
  %s5 = sld [smem:[#allocation0]]
  $region26: #{conv1x1_pad_add.1} parent=0
    _
  %s7 = ssub.s32 1, %s5
  %s8 = scalar_select 0, %s7, %s5
  // Predicated region
  $region2: #{conv1x1_pad_add.1} parent=0 // pred_check
    _
  $region3: #{conv1x1_pad_add.1} parent=0 // pred_check_branch
    %10 = sbr.rel (0) target = $region5
  $region4: #{conv1x1_pad_add.1} parent=0 // pred_region
    _
  $region5: #{conv1x1_pad_add.1} parent=0 // pred_fallthru
    _
  // Predicated region
  $region6: #{conv1x1_pad_add.1} parent=0 // pred_check
    _
  $region7: #{conv1x1_pad_add.1} parent=0 // pred_check_branch
    %12 = sbr.rel (0) target = $region9
  $region8: #{conv1x1_pad_add.1} parent=0 // pred_region
    _
  $region9: #{conv1x1_pad_add.1} parent=0 // pred_fallthru
    _
  // Predicated region
  $region10: #{conv1x1_pad_add.1} parent=0 // pred_check
    _
  $region11: #{conv1x1_pad_add.1} parent=0 // pred_check_branch
    %14 = sbr.rel (0) target = $region13
  $region12: #{conv1x1_pad_add.1} parent=0 // pred_region
    _
  $region13: #{conv1x1_pad_add.1} parent=0 // pred_fallthru
    _
  // Predicated region
  $region14: #{conv1x1_pad_add.1} parent=0 // pred_check
    _
  $region15: #{conv1x1_pad_add.1} parent=0 // pred_check_branch
    %16 = sbr.rel (0) target = $region17
  $region16: #{conv1x1_pad_add.1} parent=0 // pred_region
    _
  $region17: #{conv1x1_pad_add.1} parent=0 // pred_fallthru
    _
  %v17 = vld [vmem:[%s1] sm:$0xff]
  %v18 = vld [vmem:[%s2] sm:$0xff]
  %19 = vst [vmem:[#allocation2] sm:$0x77] 0.0
  %vm20 = vcmask 550912
  %21 = vst.msk [vmem:[#allocation2 + $0x8] sm:$0x7] %vm20, 0.0
  %v22 = vld [vmem:[%s0] sm:$0x77]
  %24 = vrot.lane.b32.xlu0 %v22, 19
  %v25 = vpop.permute.xlu0 %24
  %vm27 = vcmask 280728
  %28 = vst.msk [vmem:[#allocation2] sm:$0x7] %vm27, %v25
  %29 = vrot.lane.b32.xlu0 %v22, 21
  %v30 = vpop.permute.xlu0 %29
  %vm32 = vcmask 428328
  %33 = vst.msk [vmem:[#allocation2] sm:$0x7] %vm32, %v30
  %34 = vrot.lane.b32.xlu0 %v22, 23
  %v35 = vpop.permute.xlu0 %34
  %vm37 = vcmask 575928
  %38 = vst.msk [vmem:[#allocation2] sm:$0x7] %vm37, %v35
  %39 = vrot.lane.b32.xlu0 %v22, 25
  %v40 = vpop.permute.xlu0 %39
  %vm42 = vcmask 723528
  %43 = vst.msk [vmem:[#allocation2] sm:$0x7] %vm42, %v40
  %44 = vrot.lane.b32.xlu0 %v22, 27
  %v45 = vpop.permute.xlu0 %44
  %vm47 = vcmask 871128
  %48 = vst.msk [vmem:[#allocation2] sm:$0x7] %vm47, %v45
  %49 = vrot.lane.b32.xlu0 %v22, 29
  %v50 = vpop.permute.xlu0 %49
  %vm52 = vcmask 1018728
  %53 = vst.msk [vmem:[#allocation2] sm:$0x7] %vm52, %v50
  %54 = vrot.lane.b32.xlu0 %v22, 31
  %v55 = vpop.permute.xlu0 %54
  %v56 = vrot.slane %v55, 4
  %vm57 = vcmask 252928
  %v58 = vsel %vm57, %v56, %v55
  %vm60 = vcmask 1043448
  %vm61 = vcmask 120836
  %vm62 = vmor %vm61, %vm60
  %63 = vst.msk [vmem:[#allocation2] sm:$0x77] %vm62, %v58
  %64 = vrot.lane.b32.xlu0 %v22, 33
  %v65 = vpop.permute.xlu0 %64
  %vm67 = vcmask 264328
  %68 = vst.msk [vmem:[#allocation2 + $0x4] sm:$0x7] %vm67, %v65
  %69 = vrot.lane.b32.xlu0 %v22, 35
  %v70 = vpop.permute.xlu0 %69
  %v71 = vrot.slane %v70, 4
  %vm72 = vcmask 285696
  %v73 = vsel %vm72, %v70, %v71
  %vm75 = vcmask 411928
  %76 = vst.msk [vmem:[#allocation2 + $0x4] sm:$0x7] %vm75, %v73
  %77 = vrot.lane.b32.xlu0 %v22, 37
  %v78 = vpop.permute.xlu0 %77
  %v79 = vrot.slane %v78, 4
  %vm80 = vcmask 302080
  %v81 = vsel %vm80, %v78, %v79
  %vm83 = vcmask 559528
  %84 = vst.msk [vmem:[#allocation2 + $0x4] sm:$0x7] %vm83, %v81
  %85 = vrot.lane.b32.xlu0 %v22, 39
  %v86 = vpop.permute.xlu0 %85
  %v87 = vrot.slane %v86, 4
  %vm88 = vcmask 318464
  %v89 = vsel %vm88, %v86, %v87
  %vm91 = vcmask 707128
  %92 = vst.msk [vmem:[#allocation2 + $0x4] sm:$0x7] %vm91, %v89
  %93 = vrot.lane.b32.xlu0 %v22, 41
  %v94 = vpop.permute.xlu0 %93
  %v95 = vrot.slane %v94, 4
  %vm96 = vcmask 334848
  %v97 = vsel %vm96, %v94, %v95
  %vm99 = vcmask 854728
  %100 = vst.msk [vmem:[#allocation2 + $0x4] sm:$0x7] %vm99, %v97
  %101 = vrot.lane.b32.xlu0 %v22, 43
  %v102 = vpop.permute.xlu0 %101
  %v103 = vrot.slane %v102, 4
  %vm104 = vcmask 351232
  %v105 = vsel %vm104, %v102, %v103
  %vm107 = vcmask 1002328
  %108 = vst.msk [vmem:[#allocation2 + $0x4] sm:$0x7] %vm107, %v105
  %109 = vrot.lane.b32.xlu0 %v22, 45
  %v110 = vpop.permute.xlu0 %109
  %v111 = vrot.slane %v110, 4
  %vm112 = vcmask 367616
  %v113 = vsel %vm112, %v110, %v111
  %vm115 = vcmask 1043432
  %vm116 = vcmask 104452
  %vm117 = vmor %vm116, %vm115
  %118 = vst.msk [vmem:[#allocation2 + $0x4] sm:$0x77] %vm117, %v113
  %119 = vrot.lane.b32.xlu0 %v22, 47
  %v120 = vpop.permute.xlu0 %119
  %v121 = vrot.slane %v120, 4
  %vm123 = vcmask 247928
  %124 = vst.msk [vmem:[#allocation2 + $0x8] sm:$0x7] %vm123, %v121
  %125 = vrot.lane.b32.xlu0 %v22, 49
  %v126 = vpop.permute.xlu0 %125
  %v127 = vrot.slane %v126, 4
  %vm129 = vcmask 395528
  %130 = vst.msk [vmem:[#allocation2 + $0x8] sm:$0x7] %vm129, %v127
  %v131 = vld [vmem:[#allocation2] sm:$0x77]
  %v132 = vld [vmem:[#allocation2 + $0x8] sm:$0x7]
  %134 = vset.pattern.permute.xlu0 0
  %135 = vperm.xlu0 %134, %v17
  %v136 = vpop.permute.xlu0 %135
  %v140 = vlaneseq
  %v141 = vshrl.u32 %v140, 7
  %v142 = vsub.s32 0, %v141
  %v143 = vrot.slane %v131, %v142
  %v144 = vlaneseq
  %v145 = vshrl.u32 %v144, 7
  %v146 = vsub.s32 4, %v145
  %v147 = vrot.slane %v131, %v146
  %v148 = vlaneseq
  %v149 = vshrl.u32 %v148, 7
  %v150 = vsub.s32 0, %v149
  %v151 = vrot.slane %v132, %v150
  %v155 = vlaneseq
  %v156 = vshrl.u32 %v155, 7
  %v157 = vsub.s32 0, %v156
  %v158 = vrot.slane %v143, %v157
  %v159 = vlaneseq
  %v160 = vshrl.u32 %v159, 7
  %v161 = vsub.s32 0, %v160
  %v162 = vrot.slane %v147, %v161
  %v163 = vlaneseq
  %v164 = vshrl.u32 %v163, 7
  %v165 = vsub.s32 0, %v164
  %v166 = vrot.slane %v151, %v165
  %v167 = vmul.f32 %v136, %v158
  %v168 = vmul.f32 %v136, %v162
  %v169 = vmul.f32 %v136, %v166
  %170 = vset.pattern.permute.xlu0 1
  %171 = vperm.xlu0 %170, %v17
  %v172 = vpop.permute.xlu0 %171
  %v174 = vlaneseq
  %v175 = vshrl.u32 %v174, 7
  %v176 = vsub.s32 1, %v175
  %v177 = vrot.slane %v131, %v176
  %v178 = vlaneseq
  %v179 = vshrl.u32 %v178, 7
  %v180 = vsub.s32 5, %v179
  %v181 = vrot.slane %v131, %v180
  %v182 = vlaneseq
  %v183 = vshrl.u32 %v182, 7
  %v184 = vsub.s32 1, %v183
  %v185 = vrot.slane %v132, %v184
  %v189 = vlaneseq
  %v190 = vshrl.u32 %v189, 7
  %v191 = vsub.s32 1, %v190
  %v192 = vrot.slane %v177, %v191
  %v193 = vlaneseq
  %v194 = vshrl.u32 %v193, 7
  %v195 = vsub.s32 1, %v194
  %v196 = vrot.slane %v181, %v195
  %v197 = vlaneseq
  %v198 = vshrl.u32 %v197, 7
  %v199 = vsub.s32 1, %v198
  %v200 = vrot.slane %v185, %v199
  %v201 = vmul.f32 %v172, %v192
  %v202 = vmul.f32 %v172, %v196
  %v203 = vmul.f32 %v172, %v200
  %v204 = vadd.f32 %v167, %v201
  %v205 = vadd.f32 %v168, %v202
  %v206 = vadd.f32 %v169, %v203
  %207 = vset.pattern.permute.xlu0 2
  %208 = vperm.xlu0 %207, %v17
  %v209 = vpop.permute.xlu0 %208
  %v211 = vlaneseq
  %v212 = vshrl.u32 %v211, 7
  %v213 = vsub.s32 2, %v212
  %v214 = vrot.slane %v131, %v213
  %v215 = vlaneseq
  %v216 = vshrl.u32 %v215, 7
  %v217 = vsub.s32 6, %v216
  %v218 = vrot.slane %v131, %v217
  %v219 = vlaneseq
  %v220 = vshrl.u32 %v219, 7
  %v221 = vsub.s32 2, %v220
  %v222 = vrot.slane %v132, %v221
  %v226 = vlaneseq
  %v227 = vshrl.u32 %v226, 7
  %v228 = vsub.s32 2, %v227
  %v229 = vrot.slane %v214, %v228
  %v230 = vlaneseq
  %v231 = vshrl.u32 %v230, 7
  %v232 = vsub.s32 2, %v231
  %v233 = vrot.slane %v218, %v232
  %v234 = vlaneseq
  %v235 = vshrl.u32 %v234, 7
  %v236 = vsub.s32 2, %v235
  %v237 = vrot.slane %v222, %v236
  %v238 = vmul.f32 %v209, %v229
  %v239 = vmul.f32 %v209, %v233
  %v240 = vmul.f32 %v209, %v237
  %v241 = vadd.f32 %v204, %v238
  %v242 = vadd.f32 %v205, %v239
  %v243 = vadd.f32 %v206, %v240
  %v244 = vld [vmem:[%s3] sm:$0xff]
  %v245 = vld [vmem:[%s3 + $0x8] sm:$0xff]
  %v246 = vld [vmem:[%s3 + $0x10] sm:$0xff]
  %248 = vset.pattern.permute.xlu0 0
  %249 = vperm.xlu0 %248, %v18
  %v250 = vpop.permute.xlu0 %249
  %v252 = vadd.f32 %v244, %v250
  %v253 = vadd.f32 %v245, %v250
  %v254 = vadd.f32 %v246, %v250
  %v255 = vadd.f32 %v252, %v241
  %v256 = vadd.f32 %v253, %v242
  %v257 = vadd.f32 %v254, %v243
  %258 = vst [vmem:[%s4] sm:$0xff] %v255
  %259 = vst [vmem:[%s4 + $0x8] sm:$0xff] %v256
  %vm260 = vcmask 556032
  %261 = vst.msk [vmem:[%s4 + $0x10] sm:$0xff] %vm260, %v257
  %s262 = scalar_lea.vmem %s0, 8
  %v263 = vld [vmem:[%s262] sm:$0x77]
  %265 = vrot.lane.b32.xlu0 %v263, 19
  %v266 = vpop.permute.xlu0 %265
  %268 = vst.msk [vmem:[#allocation2] sm:$0x7] %vm27, %v266
  %269 = vrot.lane.b32.xlu0 %v263, 21
  %v270 = vpop.permute.xlu0 %269
  %272 = vst.msk [vmem:[#allocation2] sm:$0x7] %vm32, %v270
  %273 = vrot.lane.b32.xlu0 %v263, 23
  %v274 = vpop.permute.xlu0 %273
  %276 = vst.msk [vmem:[#allocation2] sm:$0x7] %vm37, %v274
  %277 = vrot.lane.b32.xlu0 %v263, 25
  %v278 = vpop.permute.xlu0 %277
  %280 = vst.msk [vmem:[#allocation2] sm:$0x7] %vm42, %v278
  %281 = vrot.lane.b32.xlu0 %v263, 27
  %v282 = vpop.permute.xlu0 %281
  %284 = vst.msk [vmem:[#allocation2] sm:$0x7] %vm47, %v282
  %285 = vrot.lane.b32.xlu0 %v263, 29
  %v286 = vpop.permute.xlu0 %285
  %288 = vst.msk [vmem:[#allocation2] sm:$0x7] %vm52, %v286
  %289 = vrot.lane.b32.xlu0 %v263, 31
  %v290 = vpop.permute.xlu0 %289
  %v291 = vrot.slane %v290, 4
  %v292 = vsel %vm57, %v291, %v290
  %294 = vst.msk [vmem:[#allocation2] sm:$0x77] %vm62, %v292
  %295 = vrot.lane.b32.xlu0 %v263, 33
  %v296 = vpop.permute.xlu0 %295
  %298 = vst.msk [vmem:[#allocation2 + $0x4] sm:$0x7] %vm67, %v296
  %299 = vrot.lane.b32.xlu0 %v263, 35
  %v300 = vpop.permute.xlu0 %299
  %v301 = vrot.slane %v300, 4
  %v302 = vsel %vm72, %v300, %v301
  %304 = vst.msk [vmem:[#allocation2 + $0x4] sm:$0x7] %vm75, %v302
  %305 = vrot.lane.b32.xlu0 %v263, 37
  %v306 = vpop.permute.xlu0 %305
  %v307 = vrot.slane %v306, 4
  %v308 = vsel %vm80, %v306, %v307
  %310 = vst.msk [vmem:[#allocation2 + $0x4] sm:$0x7] %vm83, %v308
  %311 = vrot.lane.b32.xlu0 %v263, 39
  %v312 = vpop.permute.xlu0 %311
  %v313 = vrot.slane %v312, 4
  %v314 = vsel %vm88, %v312, %v313
  %316 = vst.msk [vmem:[#allocation2 + $0x4] sm:$0x7] %vm91, %v314
  %317 = vrot.lane.b32.xlu0 %v263, 41
  %v318 = vpop.permute.xlu0 %317
  %v319 = vrot.slane %v318, 4
  %v320 = vsel %vm96, %v318, %v319
  %322 = vst.msk [vmem:[#allocation2 + $0x4] sm:$0x7] %vm99, %v320
  %323 = vrot.lane.b32.xlu0 %v263, 43
  %v324 = vpop.permute.xlu0 %323
  %v325 = vrot.slane %v324, 4
  %v326 = vsel %vm104, %v324, %v325
  %328 = vst.msk [vmem:[#allocation2 + $0x4] sm:$0x7] %vm107, %v326
  %329 = vrot.lane.b32.xlu0 %v263, 45
  %v330 = vpop.permute.xlu0 %329
  %v331 = vrot.slane %v330, 4
  %v332 = vsel %vm112, %v330, %v331
  %334 = vst.msk [vmem:[#allocation2 + $0x4] sm:$0x77] %vm117, %v332
  %335 = vrot.lane.b32.xlu0 %v263, 47
  %v336 = vpop.permute.xlu0 %335
  %v337 = vrot.slane %v336, 4
  %339 = vst.msk [vmem:[#allocation2 + $0x8] sm:$0x7] %vm123, %v337
  %340 = vrot.lane.b32.xlu0 %v263, 49
  %v341 = vpop.permute.xlu0 %340
  %v342 = vrot.slane %v341, 4
  %344 = vst.msk [vmem:[#allocation2 + $0x8] sm:$0x7] %vm129, %v342
  %v345 = vld [vmem:[#allocation2] sm:$0x77]
  %v346 = vld [vmem:[#allocation2 + $0x8] sm:$0x7]
  %v349 = vlaneseq
  %v350 = vshrl.u32 %v349, 7
  %v351 = vsub.s32 0, %v350
  %v352 = vrot.slane %v345, %v351
  %v353 = vlaneseq
  %v354 = vshrl.u32 %v353, 7
  %v355 = vsub.s32 4, %v354
  %v356 = vrot.slane %v345, %v355
  %v357 = vlaneseq
  %v358 = vshrl.u32 %v357, 7
  %v359 = vsub.s32 0, %v358
  %v360 = vrot.slane %v346, %v359
  %v364 = vlaneseq
  %v365 = vshrl.u32 %v364, 7
  %v366 = vsub.s32 0, %v365
  %v367 = vrot.slane %v352, %v366
  %v368 = vlaneseq
  %v369 = vshrl.u32 %v368, 7
  %v370 = vsub.s32 0, %v369
  %v371 = vrot.slane %v356, %v370
  %v372 = vlaneseq
  %v373 = vshrl.u32 %v372, 7
  %v374 = vsub.s32 0, %v373
  %v375 = vrot.slane %v360, %v374
  %v376 = vmul.f32 %v136, %v367
  %v377 = vmul.f32 %v136, %v371
  %v378 = vmul.f32 %v136, %v375
  %v379 = vlaneseq
  %v380 = vshrl.u32 %v379, 7
  %v381 = vsub.s32 1, %v380
  %v382 = vrot.slane %v345, %v381
  %v383 = vlaneseq
  %v384 = vshrl.u32 %v383, 7
  %v385 = vsub.s32 5, %v384
  %v386 = vrot.slane %v345, %v385
  %v387 = vlaneseq
  %v388 = vshrl.u32 %v387, 7
  %v389 = vsub.s32 1, %v388
  %v390 = vrot.slane %v346, %v389
  %v394 = vlaneseq
  %v395 = vshrl.u32 %v394, 7
  %v396 = vsub.s32 1, %v395
  %v397 = vrot.slane %v382, %v396
  %v398 = vlaneseq
  %v399 = vshrl.u32 %v398, 7
  %v400 = vsub.s32 1, %v399
  %v401 = vrot.slane %v386, %v400
  %v402 = vlaneseq
  %v403 = vshrl.u32 %v402, 7
  %v404 = vsub.s32 1, %v403
  %v405 = vrot.slane %v390, %v404
  %v406 = vmul.f32 %v172, %v397
  %v407 = vmul.f32 %v172, %v401
  %v408 = vmul.f32 %v172, %v405
  %v409 = vadd.f32 %v376, %v406
  %v410 = vadd.f32 %v377, %v407
  %v411 = vadd.f32 %v378, %v408
  %v412 = vlaneseq
  %v413 = vshrl.u32 %v412, 7
  %v414 = vsub.s32 2, %v413
  %v415 = vrot.slane %v345, %v414
  %v416 = vlaneseq
  %v417 = vshrl.u32 %v416, 7
  %v418 = vsub.s32 6, %v417
  %v419 = vrot.slane %v345, %v418
  %v420 = vlaneseq
  %v421 = vshrl.u32 %v420, 7
  %v422 = vsub.s32 2, %v421
  %v423 = vrot.slane %v346, %v422
  %v427 = vlaneseq
  %v428 = vshrl.u32 %v427, 7
  %v429 = vsub.s32 2, %v428
  %v430 = vrot.slane %v415, %v429
  %v431 = vlaneseq
  %v432 = vshrl.u32 %v431, 7
  %v433 = vsub.s32 2, %v432
  %v434 = vrot.slane %v419, %v433
  %v435 = vlaneseq
  %v436 = vshrl.u32 %v435, 7
  %v437 = vsub.s32 2, %v436
  %v438 = vrot.slane %v423, %v437
  %v439 = vmul.f32 %v209, %v430
  %v440 = vmul.f32 %v209, %v434
  %v441 = vmul.f32 %v209, %v438
  %v442 = vadd.f32 %v409, %v439
  %v443 = vadd.f32 %v410, %v440
  %v444 = vadd.f32 %v411, %v441
  %s445 = scalar_lea.vmem %s3, 24
  %v446 = vld [vmem:[%s445] sm:$0xff]
  %v447 = vld [vmem:[%s445 + $0x8] sm:$0xff]
  %v448 = vld [vmem:[%s445 + $0x10] sm:$0xff]
  %v449 = vadd.f32 %v446, %v250
  %v450 = vadd.f32 %v447, %v250
  %v451 = vadd.f32 %v448, %v250
  %v452 = vadd.f32 %v449, %v442
  %v453 = vadd.f32 %v450, %v443
  %v454 = vadd.f32 %v451, %v444
  %s455 = scalar_lea.vmem %s4, 24
  %456 = vst [vmem:[%s455] sm:$0xff] %v452
  %457 = vst [vmem:[%s455 + $0x8] sm:$0xff] %v453
  %458 = vst.msk [vmem:[%s455 + $0x10] sm:$0xff] %vm260, %v454
  // Predicated region
  $region18: #{conv1x1_pad_add.1} parent=0 // pred_check
    _
  $region19: #{conv1x1_pad_add.1} parent=0 // pred_check_branch
    %460 = sbr.rel (0) target = $region21
  $region20: #{conv1x1_pad_add.1} parent=0 // pred_region
    _
  $region21: #{conv1x1_pad_add.1} parent=0 // pred_fallthru
    _
  // Predicated region
  $region22: #{conv1x1_pad_add.1} parent=0 // pred_check
    _
  $region23: #{conv1x1_pad_add.1} parent=0 // pred_check_branch
    %462 = sbr.rel (0) target = $region25
  $region24: #{conv1x1_pad_add.1} parent=0 // pred_region
    _
  $region25: #{conv1x1_pad_add.1} parent=0 // pred_fallthru
    _

</llo_original>
